<compile_context>
chip_gen: v5e
topology: v5e:2x2
jax: 0.10.0
libtpu: 0.0.40
codegen_flags: <defaults>
</compile_context>

<pallas_src>
import functools

import jax
import jax.numpy as jnp
from jax.experimental import pallas as pl
from jax.experimental.pallas import tpu as pltpu


# --------------------------------------------------------------------------
# plain-JAX grouping glue (FPS / ball query / gathers: data-dependent,
# no clean Pallas hot path)
# --------------------------------------------------------------------------

def square_distance(src, dst):
    # ||s||^2 + ||d||^2 - 2 s.d  (matmul form avoids the [B,S,N,C] broadcast)
    s2 = jnp.sum(src * src, axis=-1, keepdims=True)            # [B,S,1]
    d2 = jnp.sum(dst * dst, axis=-1, keepdims=True)            # [B,N,1]
    cross = jnp.einsum('bsc,bnc->bsn', src, dst)                # [B,S,N]
    return s2 + jnp.swapaxes(d2, 1, 2) - 2.0 * cross


def index_points(points, idx):
    # points [B,N,C], idx [B,S] or [B,S,K] -> gathered points
    return jax.vmap(lambda p, i: p[i])(points, idx)


def farthest_point_sample(xyz, npoint):
    # TODO(synk): deterministic start index 0 (torch reference seeds with randint).
    B, N, _ = xyz.shape

    def body(i, carry):
        centroids, distance, farthest = carry
        centroids = centroids.at[:, i].set(farthest)
        centroid = jnp.take_along_axis(xyz, farthest[:, None, None], axis=1)  # [B,1,3]
        dist = jnp.sum((xyz - centroid) ** 2, axis=-1)
        distance = jnp.minimum(distance, dist)
        farthest = jnp.argmax(distance, axis=-1).astype(jnp.int32)
        return centroids, distance, farthest

    centroids = jnp.zeros((B, npoint), dtype=jnp.int32)
    distance = jnp.full((B, N), 1e10, dtype=xyz.dtype)
    farthest = jnp.zeros((B,), dtype=jnp.int32)
    centroids, _, _ = jax.lax.fori_loop(0, npoint, body,
                                        (centroids, distance, farthest))
    return centroids


def query_ball_point(radius, nsample, xyz, new_xyz):
    B, N, _ = xyz.shape
    S = new_xyz.shape[1]
    sqrdists = square_distance(new_xyz, xyz)
    idx = jnp.broadcast_to(jnp.arange(N, dtype=jnp.int32)[None, None, :], (B, S, N))
    masked = jnp.where(sqrdists > radius ** 2, N, idx)
    # Smallest `nsample` indices via partial selection (top_k of the negated
    # values) instead of a full O(N log N) sort per centroid; identical result
    # to sort(ascending)[..., :nsample].
    neg_topk, _ = jax.lax.top_k(-masked, nsample)
    group_idx = -neg_topk
    group_first = jnp.broadcast_to(group_idx[:, :, :1], (B, S, nsample))
    group_idx = jnp.where(group_idx == N, group_first, group_idx)
    return group_idx


def sample_and_group(npoint, radius, nsample, xyz, points, knn=False):
    B, N, C = xyz.shape
    fps_idx = farthest_point_sample(xyz, npoint)
    new_xyz = index_points(xyz, fps_idx)                       # [B,S,3]
    if knn:
        dists = square_distance(new_xyz, xyz)
        idx = jnp.argsort(dists, axis=-1)[:, :, :nsample]
    else:
        idx = query_ball_point(radius, nsample, xyz, new_xyz)  # [B,S,K]
    grouped_xyz = index_points(xyz, idx)                       # [B,S,K,3]
    grouped_xyz_norm = grouped_xyz - new_xyz[:, :, None, :]
    if points is not None:
        grouped_points = index_points(points, idx)             # [B,S,K,D]
        new_points = jnp.concatenate([grouped_xyz_norm, grouped_points], axis=-1)
    else:
        new_points = grouped_xyz_norm
    return new_xyz, new_points


def sample_and_group_all(xyz, points):
    B, N, C = xyz.shape
    new_xyz = jnp.zeros((B, 1, C), dtype=xyz.dtype)
    grouped_xyz = xyz.reshape(B, 1, N, C)
    if points is not None:
        new_points = jnp.concatenate([grouped_xyz, points.reshape(B, 1, N, -1)], axis=-1)
    else:
        new_points = grouped_xyz
    return new_xyz, new_points


# --------------------------------------------------------------------------
# Pallas kernel: fused (1x1 conv + folded BN + ReLU) stack + max over nsample
# --------------------------------------------------------------------------

def _mlp_max_kernel(nlayers, *refs):
    """refs = x_ref, [wT_l, bias_l] * nlayers, out_ref.

    x_ref   : [1, tS, tK, C_in]        bf16 (one (batch, S-tile, K-chunk))
    wT_l    : [C_in_l, C_out_l(_pad)]  bf16 (BN scale folded in; constant block)
    bias_l  : [1, C_out_l(_pad)]       f32  (conv bias + BN shift folded)
    out_ref : [1, tS, C_out_last_pad]  f32  -- resident across the K axis
                                            (its index_map ignores k), used
                                            directly as the running-max acc.
    """
    x_ref = refs[0]
    param_refs = refs[1:1 + 2 * nlayers]
    out_ref = refs[1 + 2 * nlayers]

    kk = pl.program_id(2)

    _, tS, tK, c_in = x_ref.shape
    # tK is a multiple of 16, so this bf16 leading-dim merge is tile-aligned.
    h = x_ref[0].reshape(tS * tK, c_in)               # bf16 [rows, C_in]
    hf = None
    for l in range(nlayers):
        wT = param_refs[2 * l][...]                   # bf16 [C_in_l, C_out_l]
        b = param_refs[2 * l + 1][...]                # f32  [1, C_out_l]
        # 1x1 conv == channel matmul on the MXU, f32 accumulation.
        acc = jnp.dot(h, wT, preferred_element_type=jnp.float32)
        hf = jnp.maximum(acc + b, 0.0)                # bias + ReLU in f32 (VPU)
        if l + 1 < nlayers:
            h = hf.astype(jnp.bfloat16)               # bf16 operand for next dot

    c_out = hf.shape[-1]
    chunk_max = jnp.max(hf.reshape(tS, tK, c_out), axis=1)   # max over this K chunk

    @pl.when(kk == 0)
    def _():
        out_ref[0] = chunk_max                        # first chunk: write directly

    @pl.when(kk > 0)
    def _():
        out_ref[0] = jnp.maximum(out_ref[0], chunk_max)


def _round_up(x, m):
    return (x + m - 1) // m * m


def _tpu_vmem_capacity_bytes():
    try:
        return int(pltpu.get_tpu_info().vmem_capacity_bytes)
    except Exception:
        return 128 * 1024 * 1024


def _run_mlp_max(new_points, params):
    """new_points: [B, S, K, C_in] channels-last. params: list of
    (w[C_out,C_in], conv_bias, gamma, beta, running_mean, running_var, eps).
    Returns [B, S, C_out_last] float32."""
    B, S, K, C_in = new_points.shape
    nlayers = len(params)
    assert nlayers >= 1

    LANE, SUB = 128, 8

    # ---- fold BatchNorm (eval mode) into the conv weight / bias -----------
    folded = []
    for (w, b_conv, gamma, beta, mean, var, eps) in params:
        scale = gamma / jnp.sqrt(var + eps)              # [C_out]
        w_f = w * scale[:, None]                         # [C_out, C_in]
        b_f = b_conv * scale + (beta - mean * scale)     # [C_out]
        folded.append((w_f, b_f))

    c_dims = [C_in] + [w.shape[0] for (w, _) in folded]
    c_last = c_dims[-1]
    # Only the FINAL output channel dim is padded to the lane width (unmasked
    # lane-dense HBM stores); all contraction dims stay natural.
    c_last_pad = _round_up(c_last, LANE)

    padded_params = []
    for l, (w_f, b_f) in enumerate(folded):
        ci, co = c_dims[l], c_dims[l + 1]
        cop = c_last_pad if l == nlayers - 1 else co
        wT = jnp.zeros((ci, cop), jnp.float32).at[:, :co].set(w_f.T)
        bb = jnp.zeros((1, cop), jnp.float32).at[0, :co].set(b_f)
        padded_params.append((wT.astype(jnp.bfloat16), bb))

    # ---- tile sizes --------------------------------------------------------
    # K chunk: multiple of 16 (bf16 sublane pack) so the in-kernel merge is an
    # aligned view; cap at 128 so group_all (K = N) still fits VMEM.
    tK = min(_round_up(K, 16), 128)
    K_pad = _round_up(K, tK)

    vmem_cap = _tpu_vmem_capacity_bytes()
    small_vmem = vmem_cap <= 64 * 1024 * 1024            # v7x-class TensorCore
    rows_target = 4096 if small_vmem else 8192           # amortize ~0.35us/step
    vmem_ceiling = (48 if small_vmem else 96) * 1024 * 1024

    widest = max(c_dims[1:] + [c_last_pad])
    # bound rows so ~3 live f32 intermediates stay within half the VMEM budget
    rows_budget = max(tK * SUB, (vmem_ceiling // 2) // (3 * 4 * widest))
    rows = min(rows_target, rows_budget)
    tS = max(SUB, min(_round_up(S, SUB), (rows // tK) // SUB * SUB))
    if B == 1:
        # keep >= 2 S tiles when possible so both v7x TensorCores get work
        tS = min(tS, max(SUB, (_round_up(S, SUB) // 2) // SUB * SUB))
    # TODO(synk): for group_all with B == 1 (single S tile) the K reduction
    # could be split into a leading "parallel" axis with per-core partial maxes.
    S_pad = _round_up(S, tS)

    # ---- activations: cast to bf16 FIRST, pad only where required ---------
    x = new_points
    if x.dtype != jnp.bfloat16:
        x = x.astype(jnp.bfloat16)
    if K_pad > K:   # edge-replicate neighbours: exact under the max reduction
        x = jnp.pad(x, ((0, 0), (0, 0), (0, K_pad - K), (0, 0)), mode="edge")
    if S_pad > S:   # padded centroids are sliced off afterwards
        x = jnp.pad(x, ((0, 0), (0, S_pad - S), (0, 0), (0, 0)), mode="edge")

    # ---- specs -------------------------------------------------------------
    grid = (B, S_pad // tS, K_pad // tK)
    flat_args = [x]
    # Natural (unpadded) C_in: a BlockSpec last dim equal to the full array
    # dim is legal and keeps the input HBM stream at its real size.
    in_specs = [pl.BlockSpec((1, tS, tK, C_in), lambda b, s, k: (b, s, k, 0))]
    for (wT, bb) in padded_params:
        flat_args += [wT, bb]
        # constant index_map -> block fetched once, not re-streamed per step
        in_specs += [pl.BlockSpec(wT.shape, lambda b, s, k: (0, 0)),
                     pl.BlockSpec(bb.shape, lambda b, s, k: (0, 0))]

    # out index_map ignores k -> block resident across the K reduction; it is
    # the running-max accumulator (no extra VMEM scratch or final copy).
    out_spec = pl.BlockSpec((1, tS, c_last_pad), lambda b, s, k: (b, s, 0))
    out_shape = jax.ShapeDtypeStruct((B, S_pad, c_last_pad), jnp.float32)

    # ---- cost / VMEM hints (real, unpadded dims) ---------------------------
    flops = 2 * B * S * K * sum(c_dims[l] * c_dims[l + 1] for l in range(nlayers))
    param_bytes = sum(wT.size * 2 + bb.size * 4 for (wT, bb) in padded_params)
    bytes_accessed = (B * S * K * C_in * 2          # bf16 activations in
                      + param_bytes                 # folded weights/bias
                      + B * S * c_last * 4)         # f32 features out

    vmem_est = (2 * tS * tK * C_in * 2              # double-buffered input tile
                + 2 * param_bytes                   # weights/bias (+buffer)
                + 2 * tS * c_last_pad * 4           # resident output block
                + 3 * tS * tK * widest * 4)         # f32 intermediates headroom
    vmem_limit = int(min(max(2 * vmem_est, 32 * 1024 * 1024), vmem_ceiling))

    kernel = functools.partial(_mlp_max_kernel, nlayers)
    out = pl.pallas_call(
        kernel,
        out_shape=out_shape,
        grid_spec=pltpu.PrefetchScalarGridSpec(
            num_scalar_prefetch=0,
            grid=grid,
            in_specs=in_specs,
            out_specs=out_spec),
        compiler_params=pltpu.CompilerParams(
            dimension_semantics=("parallel", "parallel", "arbitrary"),
            vmem_limit_bytes=vmem_limit),
        cost_estimate=pl.CostEstimate(flops=flops, transcendentals=0,
                                      bytes_accessed=bytes_accessed),
    )(*flat_args)

    return out[:, :S, :c_last]


# --------------------------------------------------------------------------
# full PointNetSetAbstraction forward
# --------------------------------------------------------------------------

def pointnet_set_abstraction(xyz, points, params, *, npoint, radius, nsample,
                             group_all, knn=False):
    if group_all:
        new_xyz, new_points = sample_and_group_all(xyz, points)
    else:
        new_xyz, new_points = sample_and_group(npoint, radius, nsample,
                                               xyz, points, knn=knn)
    # new_points: [B, S, K, C] channels-last; kernel returns [B, S, C_out],
    # matching the PyTorch output after its final transpose(1, 2).
    new_feat = _run_mlp_max(new_points, params)
    return new_xyz, new_feat


# --------------------------------------------------------------------------
# pure-JAX f32 reference for the fused hot path (validation only)
# --------------------------------------------------------------------------

def _mlp_max_reference(new_points, params):
    h = new_points.astype(jnp.float32)                 # [B,S,K,C]
    for (w, b, gamma, beta, mean, var, eps) in params:
        scale = gamma / jnp.sqrt(var + eps)
        shift = beta - mean * scale
        h = jnp.einsum('bskc,oc->bsko', h, w) + b
        h = jnp.maximum(h * scale + shift, 0.0)
    return jnp.max(h, axis=2)


# --------------------------------------------------------------------------
# main
# --------------------------------------------------------------------------

if __name__ == "__main__":
    key = jax.random.PRNGKey(0)
    B, N, D = 2, 16, 4
    npoint, radius, nsample = 8, 0.5, 8
    in_channel = 3 + D                  # grouped_xyz_norm (3) ++ point features (D)
    mlp = [16, 32]

    k_xyz, k_pts, k_par = jax.random.split(key, 3)
    xyz = jax.random.uniform(k_xyz, (B, N, 3), dtype=jnp.float32)
    points = jax.random.normal(k_pts, (B, N, D), dtype=jnp.float32)

    # Deterministic parameter init (Conv2d weight/bias + BN gamma/beta/stats).
    params = []
    last = in_channel
    eps = 1e-5
    for i, oc in enumerate(mlp):
        kl = jax.random.fold_in(k_par, i)
        kw, kb, kg, kbe = jax.random.split(kl, 4)
        w = 0.1 * jax.random.normal(kw, (oc, last), dtype=jnp.float32)
        b = 0.1 * jax.random.normal(kb, (oc,), dtype=jnp.float32)
        gamma = 1.0 + 0.1 * jax.random.normal(kg, (oc,), dtype=jnp.float32)
        beta = 0.1 * jax.random.normal(kbe, (oc,), dtype=jnp.float32)
        mean = jnp.zeros((oc,), jnp.float32)
        var = jnp.ones((oc,), jnp.float32)
        params.append((w, b, gamma, beta, mean, var, eps))
        last = oc

    new_xyz, new_feat = pointnet_set_abstraction(
        xyz, points, params,
        npoint=npoint, radius=radius, nsample=nsample,
        group_all=False, knn=False)
    jax.block_until_ready((new_xyz, new_feat))

    assert new_xyz.shape == (B, npoint, 3)
    assert new_feat.shape == (B, npoint, mlp[-1])

    # Validate the fused Pallas hot path against a pure-JAX f32 reference
    # (bf16 MXU operands -> generous tolerance).
    _, np_grp = sample_and_group(npoint, radius, nsample, xyz, points, knn=False)
    ref = _mlp_max_reference(np_grp, params)
    err = float(jnp.max(jnp.abs(new_feat - ref)))
    assert err < 5e-2, f"max abs err vs f32 reference: {err}"

    # TODO(synk): BatchNorm reproduced in eval-mode (running stats folded);
    # training-mode batch statistics are not computed inside the kernel.
    print("KERNEL_OK")
</pallas_src>

<mosaic_0001>
module attributes {stable_mosaic.version = 11 : i64} {
  func.func @_mlp_max_kernel(%arg0: i32, %arg1: i32, %arg2: i32, %arg3: memref<1x8x16x7xbf16, #tpu.memory_space<vmem>>, %arg4: memref<7x16xbf16, #tpu.memory_space<vmem>>, %arg5: memref<1x16xf32, #tpu.memory_space<vmem>>, %arg6: memref<16x128xbf16, #tpu.memory_space<vmem>>, %arg7: memref<1x128xf32, #tpu.memory_space<vmem>>, %arg8: memref<1x8x128xf32, #tpu.memory_space<vmem>>) attributes {dimension_semantics = [#tpu.dimension_semantics<parallel>, #tpu.dimension_semantics<parallel>, #tpu.dimension_semantics<arbitrary>], iteration_bounds = array<i64: 2, 1, 1>, scalar_prefetch = 0 : i64, scratch_operands = 0 : i64, tpu.core_type = #tpu.core_type<tc>, window_params = [{transform_indices = @transform_0, window_bounds = array<i64: 1, 8, 16, 7>}, {pipeline_mode = #tpu.pipeline_mode<synchronous>, transform_indices = @transform_1, window_bounds = array<i64: 7, 16>}, {pipeline_mode = #tpu.pipeline_mode<synchronous>, transform_indices = @transform_2, window_bounds = array<i64: 1, 16>}, {pipeline_mode = #tpu.pipeline_mode<synchronous>, transform_indices = @transform_3, window_bounds = array<i64: 16, 128>}, {pipeline_mode = #tpu.pipeline_mode<synchronous>, transform_indices = @transform_4, window_bounds = array<i64: 1, 128>}, {transform_indices = @transform_5, window_bounds = array<i64: 1, 8, 128>}]} {
    %c0 = arith.constant 0 : index
    %c0_0 = arith.constant 0 : index
    %c0_1 = arith.constant 0 : index
    %c0_2 = arith.constant 0 : index
    %0 = vector.load %arg3[%c0, %c0_0, %c0_1, %c0_2] : memref<1x8x16x7xbf16, #tpu.memory_space<vmem>>, vector<1x8x16x7xbf16>
    %1 = vector.shape_cast %0 : vector<1x8x16x7xbf16> to vector<8x16x7xbf16>
    %2 = vector.shape_cast %1 : vector<8x16x7xbf16> to vector<128x7xbf16>
    %c0_3 = arith.constant 0 : index
    %c0_4 = arith.constant 0 : index
    %3 = vector.load %arg4[%c0_3, %c0_4] : memref<7x16xbf16, #tpu.memory_space<vmem>>, vector<7x16xbf16>
    %c0_5 = arith.constant 0 : index
    %c0_6 = arith.constant 0 : index
    %4 = vector.load %arg5[%c0_5, %c0_6] : memref<1x16xf32, #tpu.memory_space<vmem>>, vector<1x16xf32>
    %cst = arith.constant dense<0.000000e+00> : vector<128x16xf32>
    %5 = tpu.matmul %2, %3, %cst {dimension_numbers = #tpu.dot_dimension_numbers<[1], [0], [0], [1], [0, 0, 1, 1], [], []>} : vector<128x7xbf16>, vector<7x16xbf16>, vector<128x16xf32> -> vector<128x16xf32>
    %6 = vector.broadcast %4 : vector<1x16xf32> to vector<128x16xf32>
    %7 = arith.addf %5, %6 : vector<128x16xf32>
    %cst_7 = arith.constant 0.000000e+00 : f32
    %8 = vector.broadcast %cst_7 : f32 to vector<128x16xf32>
    %9 = arith.maximumf %7, %8 : vector<128x16xf32>
    %10 = arith.truncf %9 : vector<128x16xf32> to vector<128x16xbf16>
    %c0_8 = arith.constant 0 : index
    %c0_9 = arith.constant 0 : index
    %11 = vector.load %arg6[%c0_8, %c0_9] : memref<16x128xbf16, #tpu.memory_space<vmem>>, vector<16x128xbf16>
    %c0_10 = arith.constant 0 : index
    %c0_11 = arith.constant 0 : index
    %12 = vector.load %arg7[%c0_10, %c0_11] : memref<1x128xf32, #tpu.memory_space<vmem>>, vector<1x128xf32>
    %cst_12 = arith.constant dense<0.000000e+00> : vector<128x128xf32>
    %13 = tpu.matmul %10, %11, %cst_12 {dimension_numbers = #tpu.dot_dimension_numbers<[1], [0], [0], [1], [0, 0, 1, 1], [], []>} : vector<128x16xbf16>, vector<16x128xbf16>, vector<128x128xf32> -> vector<128x128xf32>
    %14 = vector.broadcast %12 : vector<1x128xf32> to vector<128x128xf32>
    %15 = arith.addf %13, %14 : vector<128x128xf32>
    %cst_13 = arith.constant 0.000000e+00 : f32
    %16 = vector.broadcast %cst_13 : f32 to vector<128x128xf32>
    %17 = arith.maximumf %15, %16 : vector<128x128xf32>
    %18 = vector.shape_cast %17 : vector<128x128xf32> to vector<8x16x128xf32>
    %cst_14 = arith.constant dense<0xFF800000> : vector<8x128xf32>
    %19 = vector.multi_reduction <maximumf>, %18, %cst_14 [1] : vector<8x16x128xf32> to vector<8x128xf32>
    %c0_i32 = arith.constant 0 : i32
    %20 = arith.cmpi eq, %arg2, %c0_i32 : i32
    %21 = arith.extui %20 : i1 to i32
    %c0_i32_15 = arith.constant 0 : i32
    %22 = arith.cmpi ne, %21, %c0_i32_15 : i32
    scf.if %22 {
      %c0_18 = arith.constant 0 : index
      %c0_19 = arith.constant 0 : index
      %c0_20 = arith.constant 0 : index
      %26 = vector.load %arg8[%c0_18, %c0_19, %c0_20] : memref<1x8x128xf32, #tpu.memory_space<vmem>>, vector<1x8x128xf32>
      %27 = vector.shape_cast %26 : vector<1x8x128xf32> to vector<8x128xf32>
      %28 = vector.shape_cast %19 : vector<8x128xf32> to vector<1x8x128xf32>
      tpu.vector_store %arg8[%c0_18, %c0_19, %c0_20], %28 {strides = array<i32>} : memref<1x8x128xf32, #tpu.memory_space<vmem>>, vector<1x8x128xf32>,
    } else {
    }
    %c0_i32_16 = arith.constant 0 : i32
    %23 = arith.cmpi sgt, %arg2, %c0_i32_16 : i32
    %24 = arith.extui %23 : i1 to i32
    %c0_i32_17 = arith.constant 0 : i32
    %25 = arith.cmpi ne, %24, %c0_i32_17 : i32
    scf.if %25 {
      %c0_18 = arith.constant 0 : index
      %c0_19 = arith.constant 0 : index
      %c0_20 = arith.constant 0 : index
      %26 = vector.load %arg8[%c0_18, %c0_19, %c0_20] : memref<1x8x128xf32, #tpu.memory_space<vmem>>, vector<1x8x128xf32>
      %27 = vector.shape_cast %26 : vector<1x8x128xf32> to vector<8x128xf32>
      %28 = arith.maximumf %27, %19 : vector<8x128xf32>
      %c0_21 = arith.constant 0 : index
      %c0_22 = arith.constant 0 : index
      %c0_23 = arith.constant 0 : index
      %29 = vector.load %arg8[%c0_21, %c0_22, %c0_23] : memref<1x8x128xf32, #tpu.memory_space<vmem>>, vector<1x8x128xf32>
      %30 = vector.shape_cast %29 : vector<1x8x128xf32> to vector<8x128xf32>
      %31 = vector.shape_cast %28 : vector<8x128xf32> to vector<1x8x128xf32>
      tpu.vector_store %arg8[%c0_21, %c0_22, %c0_23], %31 {strides = array<i32>} : memref<1x8x128xf32, #tpu.memory_space<vmem>>, vector<1x8x128xf32>,
    } else {
    }
    return
  }
  func.func @transform_0(%arg0: i32, %arg1: i32, %arg2: i32) -> (i32, i32, i32, i32) {
    %c0_i32 = arith.constant 0 : i32
    %c0_i32_0 = arith.constant 0 : i32
    return %arg0, %arg1, %arg2, %c0_i32 : i32, i32, i32, i32
  }
  func.func @transform_1(%arg0: i32, %arg1: i32, %arg2: i32) -> (i32, i32) {
    %c0_i32 = arith.constant 0 : i32
    %c0_i32_0 = arith.constant 0 : i32
    %c0_i32_1 = arith.constant 0 : i32
    return %c0_i32, %c0_i32_0 : i32, i32
  }
  func.func @transform_2(%arg0: i32, %arg1: i32, %arg2: i32) -> (i32, i32) {
    %c0_i32 = arith.constant 0 : i32
    %c0_i32_0 = arith.constant 0 : i32
    %c0_i32_1 = arith.constant 0 : i32
    return %c0_i32, %c0_i32_0 : i32, i32
  }
  func.func @transform_3(%arg0: i32, %arg1: i32, %arg2: i32) -> (i32, i32) {
    %c0_i32 = arith.constant 0 : i32
    %c0_i32_0 = arith.constant 0 : i32
    %c0_i32_1 = arith.constant 0 : i32
    return %c0_i32, %c0_i32_0 : i32, i32
  }
  func.func @transform_4(%arg0: i32, %arg1: i32, %arg2: i32) -> (i32, i32) {
    %c0_i32 = arith.constant 0 : i32
    %c0_i32_0 = arith.constant 0 : i32
    %c0_i32_1 = arith.constant 0 : i32
    return %c0_i32, %c0_i32_0 : i32, i32
  }
  func.func @transform_5(%arg0: i32, %arg1: i32, %arg2: i32) -> (i32, i32, i32) {
    %c0_i32 = arith.constant 0 : i32
    %c0_i32_0 = arith.constant 0 : i32
    return %arg0, %arg1, %c0_i32 : i32, i32, i32
  }
}

</mosaic_0001>

<llo_original>
// kernel: tpu_custom_call.1
$region0: #{tpu_custom_call.1}
  #allocation0 [shape = 'u32[]', space=smem, size = 0x4, offset = 0x4, fixed_abs, tag = 'smem constant byte address 0x4 - core index']
  #allocation1 [shape = 'u32[72,128]{1,0:T(1,128)}', space=vmem, size = 0x9000, scoped, tag = 'internal scratch']
  %s0 = inlined_call_operand.vmem [shape: bf16[2,8,16,7], index: 0, kind: input, shape index: {}]
  %s1 = inlined_call_operand.vmem [shape: bf16[7,16], index: 1, kind: input, shape index: {}]
  %s2 = inlined_call_operand.vmem [shape: f32[1,16], index: 2, kind: input, shape index: {}]
  %s3 = inlined_call_operand.vmem [shape: bf16[16,128], index: 3, kind: input, shape index: {}]
  %s4 = inlined_call_operand.vmem [shape: f32[1,128], index: 4, kind: input, shape index: {}]
  %s5 = inlined_call_operand.hbm [shape: f32[2,8,128], index: 5, kind: output, shape index: {}]
  %s6 = sld [smem:[#allocation0]]
  $region61: #{tpu_custom_call.1} parent=0
    _
  %s8 = ssub.s32 1, %s6
  %s9 = scalar_select 0, %s8, %s6
  $region1: #{tpu_custom_call.1} parent=0
    #allocation2 [shape = 'u8[8192]{0}', space=vmem, size = 0x2000, scoped, tag = 'output window, operand 0']
    #allocation3 [shape = 's32[2]{0}', space=sflag, size = 0x8, scoped, tag = 'scoped memory for tpu_custom_call.1']
    %10 = vsyncpa [#allocation3], 0
    %s11 = scalar_lea.sflag [#allocation3], 1
    %12 = vsyncpa %s11, 0
    loop: start=0, step=1, limit=4
    $region2: #{tpu_custom_call.1} parent=1 // loop_pre_header
      _
    $region3: #{tpu_custom_call.1} parent=1 // loop_header
      %s14 = sphi 0, %s18
      %p15 = scmp.ge.s32.totalorder %s14, 4
      %s21 = sphi 0, %s40
      %s22 = sphi 0, %s36
      %s23 = sphi 0, %s32
      %s24 = sphi 0, %s21
      %s25 = sphi 0, %s22
      %s26 = sphi 0, %s23
      %s27 = sphi 0, %s24
      %s28 = sphi 0, %s25
      %s29 = sphi 0, %s26
      %s47 = sphi 0, %s49
      %s50 = sphi 0, %s47
      %s51 = sphi 0, %s50
      %s67 = sphi 0, %s51
      %s71 = sphi 0, %s71
      %s73 = sphi 0, %s71
      %s74 = sphi 0, %s73
      %s88 = sphi 0, %s74
      %s92 = sphi 0, %s92
      %s94 = sphi 0, %s92
      %s95 = sphi 0, %s94
      %s109 = sphi 0, %s95
      %s113 = sphi 0, %s113
      %s115 = sphi 0, %s113
      %s116 = sphi 0, %s115
      %s130 = sphi 0, %s116
      %s134 = sphi 0, %s134
      %s136 = sphi 0, %s134
      %s137 = sphi 0, %s136
      %s151 = sphi 0, %s137
      %s159 = sphi 0, %s161
      %s162 = sphi 0, %s159
      %s163 = sphi 0, %s162
      %s179 = sphi 0, %s163
    $region4: #{tpu_custom_call.1} parent=1 // loop_header_branch
      %17 = sbr.rel (%p15) target = $region8
    $region5: #{tpu_custom_call.1} parent=1 // loop_body
      %s19 = ssub.s32 %s14, 1
      %s20 = ssub.s32 %s14, 2
      %s30 = sadd.s32 1, %s23
      %p31 = scmp.ge.s32.totalorder %s30, 1
      %s32 = scalar_select %p31, 0, %s30
      %s33 = sadd.s32 1, %s22
      %s34 = scalar_select %p31, %s33, %s22
      %p35 = scmp.ge.s32.totalorder %s34, 1
      %s36 = scalar_select %p35, 0, %s34
      %s37 = sadd.s32 1, %s21
      %s38 = scalar_select %p35, %s37, %s21
      %p39 = scmp.ge.s32.totalorder %s38, 2
      %s40 = scalar_select %p39, 0, %s38
      %s41 = ssub.s32 %s21, %s40
      %s42 = ssub.s32 %s22, %s36
      %s43 = sor.u32 %s41, %s42
      %s44 = ssub.s32 %s23, %s32
      %s45 = sor.u32 %s43, %s44
      %p46 = scmp.eq.s32.totalorder %s45, 0
      %s48 = sadd.s32 %s47, 1
      %s49 = scalar_select %p46, %s47, %s48
      %p52 = pneg %p46
      %p53 = scmp.eq.s32.totalorder %s14, 1
      %p54 = por %p52, %p53
      %p55 = scmp.ne.s32.totalorder %s47, %s50
      %p56 = scmp.eq.s32.totalorder %s14, 0
      %p57 = por %p55, %p56
      %p58 = scmp.ne.s32.totalorder %s47, %s50
      %p59 = scmp.eq.s32.totalorder %s19, 1
      %p60 = por %p58, %p59
      %p61 = scmp.ne.s32.totalorder %s50, %s51
      %p62 = scmp.eq.s32.totalorder %s19, 0
      %p63 = por %p61, %p62
      %p64 = scmp.ne.s32.totalorder %s50, %s51
      %p65 = scmp.eq.s32.totalorder %s20, 1
      %p66 = por %p64, %p65
      %p68 = scmp.ne.s32.totalorder %s51, %s67
      %p69 = scmp.eq.s32.totalorder %s20, 0
      %p70 = por %p68, %p69
      %s72 = sadd.s32 %s71, 1
      %p75 = scmp.eq.s32.totalorder %s14, 1
      %p76 = scmp.ne.s32.totalorder %s71, %s73
      %p77 = scmp.eq.s32.totalorder %s14, 0
      %p78 = por %p76, %p77
      %p79 = scmp.ne.s32.totalorder %s71, %s73
      %p80 = scmp.eq.s32.totalorder %s19, 1
      %p81 = por %p79, %p80
      %p82 = scmp.ne.s32.totalorder %s73, %s74
      %p83 = scmp.eq.s32.totalorder %s19, 0
      %p84 = por %p82, %p83
      %p85 = scmp.ne.s32.totalorder %s73, %s74
      %p86 = scmp.eq.s32.totalorder %s20, 1
      %p87 = por %p85, %p86
      %p89 = scmp.ne.s32.totalorder %s74, %s88
      %p90 = scmp.eq.s32.totalorder %s20, 0
      %p91 = por %p89, %p90
      %s93 = sadd.s32 %s92, 1
      %p96 = scmp.eq.s32.totalorder %s14, 1
      %p97 = scmp.ne.s32.totalorder %s92, %s94
      %p98 = scmp.eq.s32.totalorder %s14, 0
      %p99 = por %p97, %p98
      %p100 = scmp.ne.s32.totalorder %s92, %s94
      %p101 = scmp.eq.s32.totalorder %s19, 1
      %p102 = por %p100, %p101
      %p103 = scmp.ne.s32.totalorder %s94, %s95
      %p104 = scmp.eq.s32.totalorder %s19, 0
      %p105 = por %p103, %p104
      %p106 = scmp.ne.s32.totalorder %s94, %s95
      %p107 = scmp.eq.s32.totalorder %s20, 1
      %p108 = por %p106, %p107
      %p110 = scmp.ne.s32.totalorder %s95, %s109
      %p111 = scmp.eq.s32.totalorder %s20, 0
      %p112 = por %p110, %p111
      %s114 = sadd.s32 %s113, 1
      %p117 = scmp.eq.s32.totalorder %s14, 1
      %p118 = scmp.ne.s32.totalorder %s113, %s115
      %p119 = scmp.eq.s32.totalorder %s14, 0
      %p120 = por %p118, %p119
      %p121 = scmp.ne.s32.totalorder %s113, %s115
      %p122 = scmp.eq.s32.totalorder %s19, 1
      %p123 = por %p121, %p122
      %p124 = scmp.ne.s32.totalorder %s115, %s116
      %p125 = scmp.eq.s32.totalorder %s19, 0
      %p126 = por %p124, %p125
      %p127 = scmp.ne.s32.totalorder %s115, %s116
      %p128 = scmp.eq.s32.totalorder %s20, 1
      %p129 = por %p127, %p128
      %p131 = scmp.ne.s32.totalorder %s116, %s130
      %p132 = scmp.eq.s32.totalorder %s20, 0
      %p133 = por %p131, %p132
      %s135 = sadd.s32 %s134, 1
      %p138 = scmp.eq.s32.totalorder %s14, 1
      %p139 = scmp.ne.s32.totalorder %s134, %s136
      %p140 = scmp.eq.s32.totalorder %s14, 0
      %p141 = por %p139, %p140
      %p142 = scmp.ne.s32.totalorder %s134, %s136
      %p143 = scmp.eq.s32.totalorder %s19, 1
      %p144 = por %p142, %p143
      %p145 = scmp.ne.s32.totalorder %s136, %s137
      %p146 = scmp.eq.s32.totalorder %s19, 0
      %p147 = por %p145, %p146
      %p148 = scmp.ne.s32.totalorder %s136, %s137
      %p149 = scmp.eq.s32.totalorder %s20, 1
      %p150 = por %p148, %p149
      %p152 = scmp.ne.s32.totalorder %s137, %s151
      %p153 = scmp.eq.s32.totalorder %s20, 0
      %p154 = por %p152, %p153
      %s155 = ssub.s32 %s21, %s40
      %s156 = ssub.s32 %s22, %s36
      %s157 = sor.u32 %s155, %s156
      %p158 = scmp.eq.s32.totalorder %s157, 0
      %s160 = sadd.s32 %s159, 1
      %s161 = scalar_select %p158, %s159, %s160
      %p164 = pneg %p158
      %p165 = scmp.eq.s32.totalorder %s14, 1
      %p166 = por %p164, %p165
      %p167 = scmp.ne.s32.totalorder %s159, %s162
      %p168 = scmp.eq.s32.totalorder %s14, 0
      %p169 = por %p167, %p168
      %p170 = scmp.ne.s32.totalorder %s159, %s162
      %p171 = scmp.eq.s32.totalorder %s19, 1
      %p172 = por %p170, %p171
      %p173 = scmp.ne.s32.totalorder %s162, %s163
      %p174 = scmp.eq.s32.totalorder %s19, 0
      %p175 = por %p173, %p174
      %p176 = scmp.ne.s32.totalorder %s162, %s163
      %p177 = scmp.eq.s32.totalorder %s20, 1
      %p178 = por %p176, %p177
      %p180 = scmp.ne.s32.totalorder %s163, %s179
      %p181 = scmp.eq.s32.totalorder %s20, 0
      %p182 = por %p180, %p181
      %p183 = scmp.le.s32.totalorder 1, %s14
      %p184 = scmp.lt.s32.totalorder %s14, 3
      %p185 = pnand %p183, %p184
      %p186 = pneg %p185
      // Predicated region
      $region9: #{tpu_custom_call.1} parent=5 // pred_check
        _
      $region10: #{tpu_custom_call.1} parent=5 // pred_check_branch
        %188 = sbr.rel (%p185) target = $region12
      $region11: #{tpu_custom_call.1} parent=5 // pred_region
        %s189 = ssub.s32 %s14, 1
        // Predicated region
        $region13: #{tpu_custom_call.1} parent=11 // pred_check
          %p190 = pneg %p84
        $region14: #{tpu_custom_call.1} parent=11 // pred_check_branch
          %192 = sbr.rel (%p190) target = $region16
        $region15: #{tpu_custom_call.1} parent=11 // pred_region
          _
        $region16: #{tpu_custom_call.1} parent=11 // pred_fallthru
          _
        // Predicated region
        $region17: #{tpu_custom_call.1} parent=11 // pred_check
          %p193 = pneg %p105
        $region18: #{tpu_custom_call.1} parent=11 // pred_check_branch
          %195 = sbr.rel (%p193) target = $region20
        $region19: #{tpu_custom_call.1} parent=11 // pred_region
          _
        $region20: #{tpu_custom_call.1} parent=11 // pred_fallthru
          _
        // Predicated region
        $region21: #{tpu_custom_call.1} parent=11 // pred_check
          %p196 = pneg %p126
        $region22: #{tpu_custom_call.1} parent=11 // pred_check_branch
          %198 = sbr.rel (%p196) target = $region24
        $region23: #{tpu_custom_call.1} parent=11 // pred_region
          _
        $region24: #{tpu_custom_call.1} parent=11 // pred_fallthru
          _
        // Predicated region
        $region25: #{tpu_custom_call.1} parent=11 // pred_check
          %p199 = pneg %p147
        $region26: #{tpu_custom_call.1} parent=11 // pred_check_branch
          %201 = sbr.rel (%p199) target = $region28
        $region27: #{tpu_custom_call.1} parent=11 // pred_region
          _
        $region28: #{tpu_custom_call.1} parent=11 // pred_fallthru
          _
      $region12: #{tpu_custom_call.1} parent=5 // pred_fallthru
        _
      %p202 = scmp.lt.s32.totalorder %s14, 2
      // Predicated region
      $region29: #{tpu_custom_call.1} parent=5 // pred_check
        %p203 = pneg %p202
      $region30: #{tpu_custom_call.1} parent=5 // pred_check_branch
        %205 = sbr.rel (%p203) target = $region32
      $region31: #{tpu_custom_call.1} parent=5 // pred_region
        // Predicated region
        $region33: #{tpu_custom_call.1} parent=31 // pred_check
          %p206 = pneg %p57
        $region34: #{tpu_custom_call.1} parent=31 // pred_check_branch
          %208 = sbr.rel (%p206) target = $region36
        $region35: #{tpu_custom_call.1} parent=31 // pred_region
          %s209 = smul.u32 8, %s22
          %s210 = smul.u32 2, %s23
          %p211 = scmp.lt.s32.totalorder %s21, 1
          %s212 = scalar_select %p211, %s21, 1
          %p213 = scmp.lt.s32.totalorder %s209, 7
          %s214 = scalar_select %p213, %s209, 7
          %p215 = scmp.lt.s32.totalorder %s210, 1
          %s216 = scalar_select %p215, %s210, 1
          %s217 = smul.addr %s214, 2
          %s218 = sadd.s32 %s216, %s217
          %s219 = smul.addr %s212, 16
          %s220 = sadd.s32 %s218, %s219
          %s221 = smul.addr %s220, 4
          %s222 = scalar_lea.vmem %s0, %s221
          %s223 = smul.u32 8, %s22
          %s224 = smul.u32 2, %s23
        $region36: #{tpu_custom_call.1} parent=31 // pred_fallthru
          _
      $region32: #{tpu_custom_call.1} parent=5 // pred_fallthru
        _
      %p225 = scmp.le.s32.totalorder 1, %s14
      %p226 = scmp.lt.s32.totalorder %s14, 3
      %p227 = pnand %p225, %p226
      %p228 = pneg %p227
      // Predicated region
      $region37: #{tpu_custom_call.1} parent=5 // pred_check
        _
      $region38: #{tpu_custom_call.1} parent=5 // pred_check_branch
        %230 = sbr.rel (%p227) target = $region40
      $region39: #{tpu_custom_call.1} parent=5 // pred_region
        %s231 = ssub.s32 %s14, 1
        %s232 = smul.u32 8, %s25
        %s233 = smul.u32 2, %s26
        %p234 = scmp.lt.s32.totalorder %s24, 1
        %s235 = scalar_select %p234, %s24, 1
        %p236 = scmp.lt.s32.totalorder %s232, 7
        %s237 = scalar_select %p236, %s232, 7
        %p238 = scmp.lt.s32.totalorder %s233, 1
        %s239 = scalar_select %p238, %s233, 1
        %s240 = smul.addr %s237, 2
        %s241 = sadd.s32 %s239, %s240
        %s242 = smul.addr %s235, 16
        %s243 = sadd.s32 %s241, %s242
        %s244 = smul.addr %s243, 4
        %s245 = scalar_lea.vmem %s0, %s244
        %p246 = pneg %p63
        %p247 = pneg %p60
        %p248 = pneg %p84
        %p249 = pneg %p81
        %p250 = pneg %p105
        %p251 = pneg %p102
        %p252 = pneg %p126
        %p253 = pneg %p123
        %p254 = pneg %p147
        %p255 = pneg %p144
        %p256 = pneg %p175
        %p257 = pneg %p172
        %s258 = sand.u32 %s162, 1
        %s259 = scalar_lea.sflag [#allocation3], %s258
        %s260 = sand.u32 %s162, 1
        %s261 = smul.addr %s260, 8
        %s262 = scalar_lea.vmem [#allocation2], %s261
        %s263 = smul.u32 8, %s25
        %s264 = smul.u32 2, %s26
        %p265 = scmp.lt.s32.totalorder %s24, 1
        %s266 = scalar_select %p265, %s24, 1
        %p267 = scmp.lt.s32.totalorder %s263, 7
        %s268 = scalar_select %p267, %s263, 7
        %p269 = scmp.lt.s32.totalorder %s264, 1
        %s270 = scalar_select %p269, %s264, 1
        %s271 = smul.addr %s268, 2
        %s272 = sadd.s32 %s270, %s271
        %s273 = smul.addr %s266, 16
        %s274 = sadd.s32 %s272, %s273
        %s275 = smul.addr %s274, 4
        %s276 = scalar_lea.vmem %s0, %s275
        %s277 = smul.u32 8, %s25
        %s278 = smul.u32 2, %s26
        %v280 = vld [vmem:[%s276] sm:$0xf]
        %v281 = vld [vmem:[%s276 + $0x4] sm:$0xf]
        %v282 = vld [vmem:[%s276 + $0x8] sm:$0xf]
        %v283 = vld [vmem:[%s276 + $0xc] sm:$0xf]
        %v284 = vld [vmem:[%s276 + $0x10] sm:$0xf]
        %v285 = vld [vmem:[%s276 + $0x14] sm:$0xf]
        %v286 = vld [vmem:[%s276 + $0x18] sm:$0xf]
        %v287 = vld [vmem:[%s276 + $0x1c] sm:$0xf]
        %v288 = vld [vmem:[%s276 + $0x20] sm:$0xf]
        %v289 = vld [vmem:[%s276 + $0x24] sm:$0xf]
        %v290 = vld [vmem:[%s276 + $0x28] sm:$0xf]
        %v291 = vld [vmem:[%s276 + $0x2c] sm:$0xf]
        %v292 = vld [vmem:[%s276 + $0x30] sm:$0xf]
        %v293 = vld [vmem:[%s276 + $0x34] sm:$0xf]
        %v294 = vld [vmem:[%s276 + $0x38] sm:$0xf]
        %v295 = vld [vmem:[%s276 + $0x3c] sm:$0xf]
        %v296 = vld [vmem:[%s1] sm:$0xf]
        %v297 = vld [vmem:[%s2] sm:$0x1]
        %v299 = vperm.slane %v297, 0
        %v317 = vunpack.c.l.b16 %v280
        %v318 = vunpack.c.l.b16 %v281
        %v319 = vunpack.c.l.b16 %v282
        %v320 = vunpack.c.l.b16 %v283
        %v321 = vunpack.c.l.b16 %v284
        %v322 = vunpack.c.l.b16 %v285
        %v323 = vunpack.c.l.b16 %v286
        %v324 = vunpack.c.l.b16 %v287
        %v325 = vunpack.c.l.b16 %v288
        %v326 = vunpack.c.l.b16 %v289
        %v327 = vunpack.c.l.b16 %v290
        %v328 = vunpack.c.l.b16 %v291
        %v329 = vunpack.c.l.b16 %v292
        %v330 = vunpack.c.l.b16 %v293
        %v331 = vunpack.c.l.b16 %v294
        %v332 = vunpack.c.l.b16 %v295
        %v333 = vpack.c.b16 %v318, %v317
        %v334 = vpack.c.b16 %v320, %v319
        %v335 = vpack.c.b16 %v322, %v321
        %v336 = vpack.c.b16 %v324, %v323
        %v337 = vpack.c.b16 %v326, %v325
        %v338 = vpack.c.b16 %v328, %v327
        %v339 = vpack.c.b16 %v330, %v329
        %v340 = vpack.c.b16 %v332, %v331
        %vm341 = vcmask 56320
        %v343 = vsel %vm341, %v333, 0
        %v346 = vsel %vm341, %v334, 0
        %v349 = vsel %vm341, %v335, 0
        %v352 = vsel %vm341, %v336, 0
        %v355 = vsel %vm341, %v337, 0
        %v358 = vsel %vm341, %v338, 0
        %v361 = vsel %vm341, %v339, 0
        %v364 = vsel %vm341, %v340, 0
        %vm366 = vcmask 1042432
        %vm367 = vcmask 1043456
        %v368 = vsel %vm366, 4294967295, 65535
        %v369 = vsel %vm367, %v368, 0
        %v371 = vand.u32 %v296, %v369
        %373 = vmatpush.bf16.msra.mxu0 0
        %374 = vmatpush.bf16.msra.mxu0 0
        %375 = vmatpush.bf16.msra.mxu0 0
        %376 = vmatpush.bf16.msra.mxu0 0
        %377 = vmatpush.bf16.msra.mxu0 0
        %378 = vmatpush.bf16.msra.mxu0 0
        %379 = vmatpush.bf16.msra.mxu0 0
        %380 = vmatpush.bf16.msra.mxu0 %v371
        %381 = vmatmul.bf16.gmra.mxu0 %v343
        %v382 = vpop.f32.mrf.mxu0
        %v383 = vadd.f32 %v299, %v382
        %v384 = vpop.f32.mrf.mxu0
        %v385 = vadd.f32 %v299, %v384
        %386 = vmatmul.bf16.gmra.mxu0 %v346
        %v387 = vpop.f32.mrf.mxu0
        %v388 = vadd.f32 %v299, %v387
        %v389 = vpop.f32.mrf.mxu0
        %v390 = vadd.f32 %v299, %v389
        %391 = vmatmul.bf16.gmra.mxu0 %v349
        %v392 = vpop.f32.mrf.mxu0
        %v393 = vadd.f32 %v299, %v392
        %v394 = vpop.f32.mrf.mxu0
        %v395 = vadd.f32 %v299, %v394
        %396 = vmatmul.bf16.gmra.mxu0 %v352
        %v397 = vpop.f32.mrf.mxu0
        %v398 = vadd.f32 %v299, %v397
        %v399 = vpop.f32.mrf.mxu0
        %v400 = vadd.f32 %v299, %v399
        %401 = vmatmul.bf16.gmra.mxu0 %v355
        %v402 = vpop.f32.mrf.mxu0
        %v403 = vadd.f32 %v299, %v402
        %v404 = vpop.f32.mrf.mxu0
        %v405 = vadd.f32 %v299, %v404
        %406 = vmatmul.bf16.gmra.mxu0 %v358
        %v407 = vpop.f32.mrf.mxu0
        %v408 = vadd.f32 %v299, %v407
        %v409 = vpop.f32.mrf.mxu0
        %v410 = vadd.f32 %v299, %v409
        %411 = vmatmul.bf16.gmra.mxu0 %v361
        %v412 = vpop.f32.mrf.mxu0
        %v413 = vadd.f32 %v299, %v412
        %v414 = vpop.f32.mrf.mxu0
        %v415 = vadd.f32 %v299, %v414
        %416 = vmatmul.bf16.gmra.mxu0 %v364
        %v417 = vpop.f32.mrf.mxu0
        %v418 = vadd.f32 %v299, %v417
        %v419 = vpop.f32.mrf.mxu0
        %v420 = vadd.f32 %v299, %v419
        %421 = vdwg.mxu0
        %v422 = vmax.f32 %v383, 0.0
        %v423 = vmax.f32 %v385, 0.0
        %v424 = vmax.f32 %v388, 0.0
        %v425 = vmax.f32 %v390, 0.0
        %v426 = vmax.f32 %v393, 0.0
        %v427 = vmax.f32 %v395, 0.0
        %v428 = vmax.f32 %v398, 0.0
        %v429 = vmax.f32 %v400, 0.0
        %v430 = vmax.f32 %v403, 0.0
        %v431 = vmax.f32 %v405, 0.0
        %v432 = vmax.f32 %v408, 0.0
        %v433 = vmax.f32 %v410, 0.0
        %v434 = vmax.f32 %v413, 0.0
        %v435 = vmax.f32 %v415, 0.0
        %v436 = vmax.f32 %v418, 0.0
        %v437 = vmax.f32 %v420, 0.0
        %v438 = vpack.c.bf16 %v423, %v422
        %v439 = vpack.c.bf16 %v425, %v424
        %v440 = vpack.c.bf16 %v427, %v426
        %v441 = vpack.c.bf16 %v429, %v428
        %v442 = vpack.c.bf16 %v431, %v430
        %v443 = vpack.c.bf16 %v433, %v432
        %v444 = vpack.c.bf16 %v435, %v434
        %v445 = vpack.c.bf16 %v437, %v436
        %v446 = vld [vmem:[%s3] sm:$0xf]
        %v447 = vld [vmem:[%s3 + $0x4] sm:$0xf]
        %v448 = vld [vmem:[%s4] sm:$0x1]
        %v450 = vperm.slane %v448, 0
        %v454 = vunpack.c.l.b16 %v446
        %v455 = vunpack.c.l.b16 %v447
        %v456 = vpack.c.b16 %v455, %v454
        %vm458 = vcmask 130048
        %v460 = vsel %vm458, %v438, 0
        %v463 = vsel %vm458, %v439, 0
        %v466 = vsel %vm458, %v440, 0
        %v469 = vsel %vm458, %v441, 0
        %v472 = vsel %vm458, %v442, 0
        %v475 = vsel %vm458, %v443, 0
        %v478 = vsel %vm458, %v444, 0
        %v481 = vsel %vm458, %v445, 0
        %483 = vmatpush.bf16.msra.mxu0 0
        %484 = vmatpush.bf16.msra.mxu0 0
        %485 = vmatpush.bf16.msra.mxu0 0
        %486 = vmatpush.bf16.msra.mxu0 0
        %487 = vmatpush.bf16.msra.mxu0 0
        %488 = vmatpush.bf16.msra.mxu0 0
        %489 = vmatpush.bf16.msra.mxu0 0
        %490 = vmatpush.bf16.msra.mxu0 %v456
        %491 = vmatmul.bf16.gmra.mxu0 %v460
        %v492 = vpop.f32.mrf.mxu0
        %v493 = vadd.f32 %v450, %v492
        %v494 = vpop.f32.mrf.mxu0
        %v495 = vadd.f32 %v450, %v494
        %496 = vmatmul.bf16.gmra.mxu0 %v463
        %v497 = vpop.f32.mrf.mxu0
        %v498 = vadd.f32 %v450, %v497
        %v499 = vpop.f32.mrf.mxu0
        %v500 = vadd.f32 %v450, %v499
        %501 = vmatmul.bf16.gmra.mxu0 %v466
        %v502 = vpop.f32.mrf.mxu0
        %v503 = vadd.f32 %v450, %v502
        %v504 = vpop.f32.mrf.mxu0
        %v505 = vadd.f32 %v450, %v504
        %506 = vmatmul.bf16.gmra.mxu0 %v469
        %v507 = vpop.f32.mrf.mxu0
        %v508 = vadd.f32 %v450, %v507
        %v509 = vpop.f32.mrf.mxu0
        %v510 = vadd.f32 %v450, %v509
        %511 = vmatmul.bf16.gmra.mxu0 %v472
        %v512 = vpop.f32.mrf.mxu0
        %v513 = vadd.f32 %v450, %v512
        %v514 = vpop.f32.mrf.mxu0
        %v515 = vadd.f32 %v450, %v514
        %516 = vmatmul.bf16.gmra.mxu0 %v475
        %v517 = vpop.f32.mrf.mxu0
        %v518 = vadd.f32 %v450, %v517
        %v519 = vpop.f32.mrf.mxu0
        %v520 = vadd.f32 %v450, %v519
        %521 = vmatmul.bf16.gmra.mxu0 %v478
        %v522 = vpop.f32.mrf.mxu0
        %v523 = vadd.f32 %v450, %v522
        %v524 = vpop.f32.mrf.mxu0
        %v525 = vadd.f32 %v450, %v524
        %526 = vmatmul.bf16.gmra.mxu0 %v481
        %v527 = vpop.f32.mrf.mxu0
        %v528 = vadd.f32 %v450, %v527
        %v529 = vpop.f32.mrf.mxu0
        %v530 = vadd.f32 %v450, %v529
        %531 = vdwg.mxu0
        %v532 = vmax.f32 %v493, 0.0
        %v533 = vmax.f32 %v495, 0.0
        %v534 = vmax.f32 %v498, 0.0
        %v535 = vmax.f32 %v500, 0.0
        %v536 = vmax.f32 %v503, 0.0
        %v537 = vmax.f32 %v505, 0.0
        %v538 = vmax.f32 %v508, 0.0
        %v539 = vmax.f32 %v510, 0.0
        %v540 = vmax.f32 %v513, 0.0
        %v541 = vmax.f32 %v515, 0.0
        %v542 = vmax.f32 %v518, 0.0
        %v543 = vmax.f32 %v520, 0.0
        %v544 = vmax.f32 %v523, 0.0
        %v545 = vmax.f32 %v525, 0.0
        %v546 = vmax.f32 %v528, 0.0
        %v547 = vmax.f32 %v530, 0.0
        %v548 = vmax.f32 %v532, %v533
        %v549 = vrot.slane %v548, 4
        %v550 = vmax.f32 %v548, %v549
        %v551 = vrot.slane %v550, 2
        %v552 = vmax.f32 %v550, %v551
        %v553 = vrot.slane %v552, 1
        %v554 = vmax.f32 %v552, %v553
        %v555 = vmax.f32 %v534, %v535
        %v556 = vrot.slane %v555, 4
        %v557 = vmax.f32 %v555, %v556
        %v558 = vrot.slane %v557, 2
        %v559 = vmax.f32 %v557, %v558
        %v560 = vrot.slane %v559, 1
        %v561 = vmax.f32 %v559, %v560
        %v562 = vmax.f32 %v536, %v537
        %v563 = vrot.slane %v562, 4
        %v564 = vmax.f32 %v562, %v563
        %v565 = vrot.slane %v564, 2
        %v566 = vmax.f32 %v564, %v565
        %v567 = vrot.slane %v566, 1
        %v568 = vmax.f32 %v566, %v567
        %v569 = vmax.f32 %v538, %v539
        %v570 = vrot.slane %v569, 4
        %v571 = vmax.f32 %v569, %v570
        %v572 = vrot.slane %v571, 2
        %v573 = vmax.f32 %v571, %v572
        %v574 = vrot.slane %v573, 1
        %v575 = vmax.f32 %v573, %v574
        %v576 = vmax.f32 %v540, %v541
        %v577 = vrot.slane %v576, 4
        %v578 = vmax.f32 %v576, %v577
        %v579 = vrot.slane %v578, 2
        %v580 = vmax.f32 %v578, %v579
        %v581 = vrot.slane %v580, 1
        %v582 = vmax.f32 %v580, %v581
        %v583 = vmax.f32 %v542, %v543
        %v584 = vrot.slane %v583, 4
        %v585 = vmax.f32 %v583, %v584
        %v586 = vrot.slane %v585, 2
        %v587 = vmax.f32 %v585, %v586
        %v588 = vrot.slane %v587, 1
        %v589 = vmax.f32 %v587, %v588
        %v590 = vmax.f32 %v544, %v545
        %v591 = vrot.slane %v590, 4
        %v592 = vmax.f32 %v590, %v591
        %v593 = vrot.slane %v592, 2
        %v594 = vmax.f32 %v592, %v593
        %v595 = vrot.slane %v594, 1
        %v596 = vmax.f32 %v594, %v595
        %v597 = vmax.f32 %v546, %v547
        %v598 = vrot.slane %v597, 4
        %v599 = vmax.f32 %v597, %v598
        %v600 = vrot.slane %v599, 2
        %v601 = vmax.f32 %v599, %v600
        %v602 = vrot.slane %v601, 1
        %v603 = vmax.f32 %v601, %v602
        %p604 = scmp.eq.s32.totalorder %s26, 0
        // Predicated region
        $region41: #{tpu_custom_call.1} parent=39 // pred_check
          %p605 = pneg %p604
        $region42: #{tpu_custom_call.1} parent=39 // pred_check_branch
          %607 = sbr.rel (%p605) target = $region44
        $region43: #{tpu_custom_call.1} parent=39 // pred_region
          %vm616 = vcmask 1041409
          %v617 = vsel %vm616, %v561, %v554
          %vm618 = vcmask 1042434
          %v619 = vsel %vm618, %v568, %v617
          %vm620 = vcmask 1043459
          %v621 = vsel %vm620, %v575, %v619
          %vm622 = vcmask 1044484
          %v623 = vsel %vm622, %v582, %v621
          %vm624 = vcmask 1045509
          %v625 = vsel %vm624, %v589, %v623
          %vm626 = vcmask 1046534
          %v627 = vsel %vm626, %v596, %v625
          %vm628 = vcmask 1047559
          %v629 = vsel %vm628, %v603, %v627
          %631 = vst [vmem:[%s262] sm:$0xff] %v629
        $region44: #{tpu_custom_call.1} parent=39 // pred_fallthru
          _
        %p632 = scmp.gt.s32.totalorder %s26, 0
        // Predicated region
        $region45: #{tpu_custom_call.1} parent=39 // pred_check
          %p633 = pneg %p632
        $region46: #{tpu_custom_call.1} parent=39 // pred_check_branch
          %635 = sbr.rel (%p633) target = $region48
        $region47: #{tpu_custom_call.1} parent=39 // pred_region
          %v636 = vld [vmem:[%s262] sm:$0xff]
          %vm645 = vcmask 1041409
          %v646 = vsel %vm645, %v561, %v554
          %vm647 = vcmask 1042434
          %v648 = vsel %vm647, %v568, %v646
          %vm649 = vcmask 1043459
          %v650 = vsel %vm649, %v575, %v648
          %vm651 = vcmask 1044484
          %v652 = vsel %vm651, %v582, %v650
          %vm653 = vcmask 1045509
          %v654 = vsel %vm653, %v589, %v652
          %vm655 = vcmask 1046534
          %v656 = vsel %vm655, %v596, %v654
          %vm657 = vcmask 1047559
          %v658 = vsel %vm657, %v603, %v656
          %v660 = vmax.f32 %v636, %v658
          %661 = vst [vmem:[%s262] sm:$0xff] %v660
        $region48: #{tpu_custom_call.1} parent=39 // pred_fallthru
          _
        %s662 = sand.u32 %s162, 1
        %s663 = scalar_lea.sflag [#allocation3], %s662
        %s664 = sand.u32 %s162, 1
        %s665 = smul.addr %s664, 8
        %s666 = scalar_lea.vmem [#allocation2], %s665
        // Predicated region
        $region49: #{tpu_custom_call.1} parent=39 // pred_check
          %p667 = pneg %p172
        $region50: #{tpu_custom_call.1} parent=39 // pred_check_branch
          %669 = sbr.rel (%p667) target = $region52
        $region51: #{tpu_custom_call.1} parent=39 // pred_region
          %671 = vsyncadd %s663, 0
          %s672 = sadd.s32 %s25, %s24
          %s673 = smul.addr %s672, 8
          %s674 = scalar_lea.hbm %s5, %s673
          %s676 = sshll.u32 %s666, 4
          %s677 = int_to_ptr.vmem [resolvable:$true] %s676
          %s678 = sshll.u32 %s674, 4
          %s679 = int_to_ptr.hbm [resolvable:$true] %s678
          %681 = dma.vmem_to_hbm [thread:$0]  %s677, 128, %s679, %s663
        $region52: #{tpu_custom_call.1} parent=39 // pred_fallthru
          _
      $region40: #{tpu_custom_call.1} parent=5 // pred_fallthru
        _
      %p682 = scmp.le.s32.totalorder 2, %s14
      // Predicated region
      $region53: #{tpu_custom_call.1} parent=5 // pred_check
        %p683 = pneg %p682
      $region54: #{tpu_custom_call.1} parent=5 // pred_check_branch
        %685 = sbr.rel (%p683) target = $region56
      $region55: #{tpu_custom_call.1} parent=5 // pred_region
        %s686 = ssub.s32 %s14, 2
        // Predicated region
        $region57: #{tpu_custom_call.1} parent=55 // pred_check
          %p687 = pneg %p178
        $region58: #{tpu_custom_call.1} parent=55 // pred_check_branch
          %689 = sbr.rel (%p687) target = $region60
        $region59: #{tpu_custom_call.1} parent=55 // pred_region
          %s690 = sand.u32 %s163, 1
          %s691 = scalar_lea.sflag [#allocation3], %s690
          %s692 = sand.u32 %s163, 1
          %s693 = smul.addr %s692, 8
          %s694 = scalar_lea.vmem [#allocation2], %s693
          %696 = dma.done %s691, 128
        $region60: #{tpu_custom_call.1} parent=55 // pred_fallthru
          _
      $region56: #{tpu_custom_call.1} parent=5 // pred_fallthru
        _
    $region6: #{tpu_custom_call.1} parent=1 // loop_footer
      %s18 = sadd.s32 1, %s14
    $region7: #{tpu_custom_call.1} parent=1 // loop_footer_branch
      %13 = sbr.rel target = $region3
    $region8: #{tpu_custom_call.1} parent=1 // loop_exit
      _
    %697 = vsyncpa [#allocation3], 1
    %s698 = scalar_lea.sflag [#allocation3], 1
    %699 = vsyncpa %s698, 1

</llo_original>
